<compile_context>
chip_gen: v5e
topology: v5e:2x2
jax: 0.10.0
libtpu: 0.0.40
codegen_flags: <defaults>
</compile_context>

<pallas_src>
import functools

import jax
import jax.numpy as jnp
from jax.experimental import pallas as pl
from jax.experimental.pallas import tpu as pltpu


def _round_up(x, m):
    return ((x + m - 1) // m) * m


def _kp_to_heatmap_kernel(kp_ref, out_ref, *, sigma, heatmap_width):
    # kp_ref:  VMEM block (TN, 3)    float32  (x, y, scale)
    # out_ref: VMEM block (TN, H*W)  out_dtype
    H = W = heatmap_width
    TN = out_ref.shape[0]

    kp = kp_ref[...]                         # (TN, 3) f32
    x = kp[:, 0:1]                           # (TN, 1)
    y = kp[:, 1:2]                           # (TN, 1)
    s = kp[:, 2:3]                           # (TN, 1)

    # Trace-time constant: multiply by -1/kw instead of dividing per element.
    neg_inv_kw = -1.0 / (2.0 * (float(sigma) / float(heatmap_width)) ** 2)

    # Pixel-center coordinates straight from 1-D iotas (no flattened %, //).
    gx = (jax.lax.broadcasted_iota(jnp.int32, (1, W), 1).astype(jnp.float32)
          * (2.0 / (W - 1)) - 1.0)           # (1, W): -1 .. 1  left -> right
    gy = (jax.lax.broadcasted_iota(jnp.int32, (1, H), 1).astype(jnp.float32)
          * (-2.0 / (H - 1)) + 1.0)          # (1, H):  1 .. -1 top  -> bottom

    # Separable Gaussian: H + W transcendentals per keypoint (not H*W).
    dx = gx - x                              # (TN, W)
    dy = gy - y                              # (TN, H)
    ex = jnp.exp(dx * dx * neg_inv_kw)       # (TN, W)
    ey = s * jnp.exp(dy * dy * neg_inv_kw)   # (TN, H), scale folded in once

    # Per-row outer product, collapsed back to the lane-dense flattened slab.
    heat = (ey[:, :, None] * ex[:, None, :]).reshape(TN, H * W)   # (TN, H*W)
    out_ref[...] = heat.astype(out_ref.dtype)


def _choose_tiling(n_rows, block_n, hw, out_itemsize):
    """Balanced, sublane-legal (TN, N_pad, num_steps) selection."""
    # Sublane packing of the *output* dtype (f32 -> 8, bf16 -> 16).
    mult = max(8, 32 // max(1, int(out_itemsize)))
    block_n = max(mult, _round_up(int(block_n), mult))

    # VMEM guard: keep one out block (f32-equivalent, which also bounds the
    # in-kernel f32 temporaries) at <= ~2 MiB so 2x double-buffered output plus
    # temps fit v5e's 16 MiB scoped limit and v7x's 64 MiB physical VMEM.
    rows_cap = max(mult, ((2 * 1024 * 1024) // (hw * 4)) // mult * mult)
    block_n = min(block_n, rows_cap)

    n_pad_min = _round_up(n_rows, mult)
    num_steps = -(-n_pad_min // block_n)
    # v7x: make sure the "parallel" axis has >= 2 steps when there is enough
    # work, so both TensorCores get a share of the grid.
    if n_pad_min > 2 * mult and num_steps < 2:
        num_steps = 2
    tn = _round_up(-(-n_pad_min // num_steps), mult)
    n_pad = num_steps * tn
    return tn, n_pad, num_steps


def keypoints_to_heatmaps(keypoints, sigma, heatmap_width, *, block_n=256,
                          out_dtype=jnp.float32):
    """keypoints: [B, K, 3] float32 -> heatmaps [B, K, H, W] (NCHW).

    out_dtype=jnp.bfloat16 is strongly encouraged when downstream tolerates it:
    after the separable-exp fix the kernel is HBM-writeback bound and bf16
    halves the output bytes.  Math is always f32; only the final store casts.
    """
    B, K, C = keypoints.shape
    assert C == 3, "keypoints last dim must be (x, y, scale)"
    H = W = int(heatmap_width)
    assert H >= 2, "heatmap_width must be >= 2 (linspace needs W-1 > 0)"

    N = B * K
    kp_flat = keypoints.reshape(N, 3).astype(jnp.float32)

    out_itemsize = jnp.dtype(out_dtype).itemsize
    TN, N_pad, num_steps = _choose_tiling(N, block_n, H * W, out_itemsize)
    if N_pad != N:
        # Padded rows have scale = 0 -> their heatmap rows are exactly zero.
        kp_flat = jnp.pad(kp_flat, ((0, N_pad - N), (0, 0)))

    cost = pl.CostEstimate(
        flops=int(3 * N_pad * H * W),
        transcendentals=int(N_pad * (H + W)),
        bytes_accessed=int(N_pad * H * W * out_itemsize + N_pad * 3 * 4),
    )

    out_flat = pl.pallas_call(
        functools.partial(
            _kp_to_heatmap_kernel, sigma=float(sigma), heatmap_width=H
        ),
        out_shape=jax.ShapeDtypeStruct((N_pad, H * W), out_dtype),
        grid=(num_steps,),
        in_specs=[pl.BlockSpec((TN, 3), lambda n: (n, 0))],
        out_specs=pl.BlockSpec((TN, H * W), lambda n: (n, 0)),
        compiler_params=pltpu.CompilerParams(
            dimension_semantics=("parallel",)
        ),
        cost_estimate=cost,
    )(kp_flat)

    return out_flat[:N].reshape(B, K, H, W)


def _reference(keypoints, sigma, heatmap_width):
    # Pure-JAX reference for the correctness check.
    H = W = heatmap_width
    x = keypoints[..., 0][:, :, None, None]
    y = keypoints[..., 1][:, :, None, None]
    s = keypoints[..., 2][:, :, None, None]
    gx = jnp.linspace(-1.0, 1.0, W).reshape(1, 1, 1, W)
    gy = jnp.linspace(1.0, -1.0, H).reshape(1, 1, H, 1)
    kw = 2.0 * (sigma / heatmap_width) ** 2
    return s * jnp.exp(-((gx - x) ** 2 + (gy - y) ** 2) / kw)


if __name__ == "__main__":
    # Module hyperparameters (deterministic, in-script).
    sigma = 1.5
    heatmap_width = 16

    key = jax.random.PRNGKey(0)
    k_xy, k_sc = jax.random.split(key)
    B, K = 2, 4
    xy = jax.random.uniform(k_xy, (B, K, 2), jnp.float32, -1.0, 1.0)
    sc = jax.random.uniform(k_sc, (B, K, 1), jnp.float32, 0.0, 1.0)
    keypoints = jnp.concatenate([xy, sc], axis=-1)  # [B, K, 3]

    ref = _reference(keypoints, sigma, heatmap_width)

    # f32 output (matches the PyTorch module's dtype): tight check.
    heatmaps = jax.block_until_ready(
        keypoints_to_heatmaps(keypoints, sigma, heatmap_width))
    assert heatmaps.shape == (B, K, heatmap_width, heatmap_width)
    assert heatmaps.dtype == jnp.float32
    assert jnp.allclose(heatmaps, ref, atol=1e-5, rtol=1e-5)

    # bf16 output path (recommended HBM-writeback-bound config): loose check.
    hm_bf16 = jax.block_until_ready(
        keypoints_to_heatmaps(keypoints, sigma, heatmap_width,
                              out_dtype=jnp.bfloat16))
    assert hm_bf16.dtype == jnp.bfloat16
    assert jnp.allclose(hm_bf16.astype(jnp.float32), ref, atol=1e-2, rtol=2e-2)

    print("KERNEL_OK")
</pallas_src>

<mosaic_0001>
module attributes {stable_mosaic.version = 11 : i64} {
  func.func @_kp_to_heatmap_kernel(%arg0: i32, %arg1: memref<8x3xf32, #tpu.memory_space<vmem>>, %arg2: memref<8x256xf32, #tpu.memory_space<vmem>>) attributes {dimension_semantics = [#tpu.dimension_semantics<parallel>], iteration_bounds = array<i64: 1>, scalar_prefetch = 0 : i64, scratch_operands = 0 : i64, tpu.core_type = #tpu.core_type<tc>, window_params = [{transform_indices = @transform_0, window_bounds = array<i64: 8, 3>}, {transform_indices = @transform_1, window_bounds = array<i64: 8, 256>}]} {
    %c0 = arith.constant 0 : index
    %c0_0 = arith.constant 0 : index
    %0 = vector.load %arg1[%c0, %c0_0] : memref<8x3xf32, #tpu.memory_space<vmem>>, vector<8x3xf32>
    %1 = vector.extract_strided_slice %0 {offsets = [0, 0], sizes = [8, 1], strides = [1, 1]} : vector<8x3xf32> to vector<8x1xf32>
    %2 = vector.extract_strided_slice %0 {offsets = [0, 1], sizes = [8, 1], strides = [1, 1]} : vector<8x3xf32> to vector<8x1xf32>
    %3 = vector.extract_strided_slice %0 {offsets = [0, 2], sizes = [8, 1], strides = [1, 1]} : vector<8x3xf32> to vector<8x1xf32>
    %4 = tpu.iota {dimensions = array<i32: 1>} : vector<1x16xi32>
    %5 = arith.sitofp %4 : vector<1x16xi32> to vector<1x16xf32>
    %cst = arith.constant 0.13333334 : f32
    %6 = vector.broadcast %cst : f32 to vector<1x16xf32>
    %7 = arith.mulf %5, %6 : vector<1x16xf32>
    %cst_1 = arith.constant 1.000000e+00 : f32
    %8 = vector.broadcast %cst_1 : f32 to vector<1x16xf32>
    %9 = arith.subf %7, %8 : vector<1x16xf32>
    %10 = tpu.iota {dimensions = array<i32: 1>} : vector<1x16xi32>
    %11 = arith.sitofp %10 : vector<1x16xi32> to vector<1x16xf32>
    %cst_2 = arith.constant -0.13333334 : f32
    %12 = vector.broadcast %cst_2 : f32 to vector<1x16xf32>
    %13 = arith.mulf %11, %12 : vector<1x16xf32>
    %cst_3 = arith.constant 1.000000e+00 : f32
    %14 = vector.broadcast %cst_3 : f32 to vector<1x16xf32>
    %15 = arith.addf %13, %14 : vector<1x16xf32>
    %16 = vector.broadcast %9 : vector<1x16xf32> to vector<8x16xf32>
    %17 = vector.broadcast %1 : vector<8x1xf32> to vector<8x16xf32>
    %18 = arith.subf %16, %17 : vector<8x16xf32>
    %19 = vector.broadcast %15 : vector<1x16xf32> to vector<8x16xf32>
    %20 = vector.broadcast %2 : vector<8x1xf32> to vector<8x16xf32>
    %21 = arith.subf %19, %20 : vector<8x16xf32>
    %22 = arith.mulf %18, %18 : vector<8x16xf32>
    %cst_4 = arith.constant -56.8888893 : f32
    %23 = vector.broadcast %cst_4 : f32 to vector<8x16xf32>
    %24 = arith.mulf %22, %23 : vector<8x16xf32>
    %25 = math.exp %24 : vector<8x16xf32>
    %26 = arith.mulf %21, %21 : vector<8x16xf32>
    %cst_5 = arith.constant -56.8888893 : f32
    %27 = vector.broadcast %cst_5 : f32 to vector<8x16xf32>
    %28 = arith.mulf %26, %27 : vector<8x16xf32>
    %29 = math.exp %28 : vector<8x16xf32>
    %30 = vector.broadcast %3 : vector<8x1xf32> to vector<8x16xf32>
    %31 = arith.mulf %30, %29 : vector<8x16xf32>
    %32 = vector.shape_cast %31 : vector<8x16xf32> to vector<8x16x1xf32>
    %33 = vector.shape_cast %25 : vector<8x16xf32> to vector<8x1x16xf32>
    %34 = vector.broadcast %32 : vector<8x16x1xf32> to vector<8x16x16xf32>
    %35 = vector.broadcast %33 : vector<8x1x16xf32> to vector<8x16x16xf32>
    %36 = arith.mulf %34, %35 : vector<8x16x16xf32>
    %37 = vector.shape_cast %36 : vector<8x16x16xf32> to vector<8x256xf32>
    %c0_6 = arith.constant 0 : index
    %c0_7 = arith.constant 0 : index
    %38 = vector.load %arg2[%c0_6, %c0_7] : memref<8x256xf32, #tpu.memory_space<vmem>>, vector<8x256xf32>
    tpu.vector_store %arg2[%c0_6, %c0_7], %37 {strides = array<i32>} : memref<8x256xf32, #tpu.memory_space<vmem>>, vector<8x256xf32>,
    return
  }
  func.func @transform_0(%arg0: i32) -> (i32, i32) {
    %c0_i32 = arith.constant 0 : i32
    %c0_i32_0 = arith.constant 0 : i32
    return %arg0, %c0_i32 : i32, i32
  }
  func.func @transform_1(%arg0: i32) -> (i32, i32) {
    %c0_i32 = arith.constant 0 : i32
    %c0_i32_0 = arith.constant 0 : i32
    return %arg0, %c0_i32 : i32, i32
  }
}

</mosaic_0001>

<llo_original>
// kernel: tpu_custom_call.1
$region0: #{tpu_custom_call.1}
  #allocation0 [shape = 'u32[]', space=smem, size = 0x4, offset = 0x4, fixed_abs, tag = 'smem constant byte address 0x4 - core index']
  #allocation1 [shape = 'u32[72,128]{1,0:T(1,128)}', space=vmem, size = 0x9000, scoped, tag = 'internal scratch']
  %s0 = inlined_call_operand.vmem [shape: f32[8,3], index: 0, kind: input, shape index: {}]
  %s1 = inlined_call_operand.hbm [shape: f32[8,256], index: 1, kind: output, shape index: {}]
  %s2 = sld [smem:[#allocation0]]
  $region14: #{tpu_custom_call.1} parent=0
    _
  %s4 = ssub.s32 1, %s2
  %s5 = scalar_select 0, %s4, %s2
  $region1: #{tpu_custom_call.1} parent=0
    #allocation2 [shape = 'u8[8192]{0}', space=vmem, size = 0x2000, scoped, tag = 'output window, operand 0, single buffered']
    #allocation3 [shape = 's32[1]{0}', space=sflag, size = 0x4, scoped, tag = 'scoped memory for tpu_custom_call.1']
    %6 = vsyncpa [#allocation3], 0
    // Predicated region
    $region2: #{tpu_custom_call.1} parent=1 // pred_check
      _
    $region3: #{tpu_custom_call.1} parent=1 // pred_check_branch
      %8 = sbr.rel (0) target = $region5
    $region4: #{tpu_custom_call.1} parent=1 // pred_region
      _
    $region5: #{tpu_custom_call.1} parent=1 // pred_fallthru
      _
    %v9 = vld [vmem:[%s0] sm:$0xff]
    %v10 = vlaneseq
    %v11 = vand.u32 %v10, 127
    %v12 = vcvt.s32.f32 %v11
    %v13 = vmul.f32 %v12, 0.13333334
    %v14 = vsub.f32 %v13, 1.0
    %v15 = vmul.f32 %v12, -0.13333334
    %v16 = vadd.f32 %v15, 1.0
    %18 = vset.pattern.permute.xlu0 0
    %19 = vperm.xlu0 %18, %v9
    %v20 = vpop.permute.xlu0 %19
    %v22 = vsub.f32 %v14, %v20
    %23 = vset.pattern.permute.xlu0 1
    %24 = vperm.xlu0 %23, %v9
    %v25 = vpop.permute.xlu0 %24
    %v27 = vsub.f32 %v16, %v25
    %v28 = vmul.f32 %v22, %v22
    %v29 = vmul.f32 %v28, -56.88889
    %v30 = vmul.f32 %v29, 1.442695
    %v31 = vpow.pop %v30
    %v32 = vmul.f32 %v27, %v27
    %v33 = vmul.f32 %v32, -56.88889
    %v34 = vmul.f32 %v33, 1.442695
    %v35 = vpow.pop %v34
    %36 = vset.pattern.permute.xlu0 2
    %37 = vperm.xlu0 %36, %v9
    %v38 = vpop.permute.xlu0 %37
    %v40 = vmul.f32 %v38, %v35
    %v41 = vperm.slane %v40, 0
    %v42 = vlaneseq
    %v43 = vshrl.u32 %v42, 7
    %45 = vset.pattern.permute.xlu0 %v43
    %46 = vperm.xlu0 %45, %v41
    %v47 = vpop.permute.xlu0 %46
    %v48 = vlaneseq
    %v49 = vshrl.u32 %v48, 7
    %v50 = vadd.s32 %v49, 8
    %51 = vset.pattern.permute.xlu0 %v50
    %52 = vperm.xlu0 %51, %v41
    %v53 = vpop.permute.xlu0 %52
    %v54 = vperm.slane %v40, 1
    %v55 = vlaneseq
    %v56 = vshrl.u32 %v55, 7
    %58 = vset.pattern.permute.xlu0 %v56
    %59 = vperm.xlu0 %58, %v54
    %v60 = vpop.permute.xlu0 %59
    %v61 = vlaneseq
    %v62 = vshrl.u32 %v61, 7
    %v63 = vadd.s32 %v62, 8
    %64 = vset.pattern.permute.xlu0 %v63
    %65 = vperm.xlu0 %64, %v54
    %v66 = vpop.permute.xlu0 %65
    %v67 = vperm.slane %v40, 2
    %v68 = vlaneseq
    %v69 = vshrl.u32 %v68, 7
    %71 = vset.pattern.permute.xlu0 %v69
    %72 = vperm.xlu0 %71, %v67
    %v73 = vpop.permute.xlu0 %72
    %v74 = vlaneseq
    %v75 = vshrl.u32 %v74, 7
    %v76 = vadd.s32 %v75, 8
    %77 = vset.pattern.permute.xlu0 %v76
    %78 = vperm.xlu0 %77, %v67
    %v79 = vpop.permute.xlu0 %78
    %v80 = vperm.slane %v40, 3
    %v81 = vlaneseq
    %v82 = vshrl.u32 %v81, 7
    %84 = vset.pattern.permute.xlu0 %v82
    %85 = vperm.xlu0 %84, %v80
    %v86 = vpop.permute.xlu0 %85
    %v87 = vlaneseq
    %v88 = vshrl.u32 %v87, 7
    %v89 = vadd.s32 %v88, 8
    %90 = vset.pattern.permute.xlu0 %v89
    %91 = vperm.xlu0 %90, %v80
    %v92 = vpop.permute.xlu0 %91
    %v93 = vperm.slane %v40, 4
    %v94 = vlaneseq
    %v95 = vshrl.u32 %v94, 7
    %97 = vset.pattern.permute.xlu0 %v95
    %98 = vperm.xlu0 %97, %v93
    %v99 = vpop.permute.xlu0 %98
    %v100 = vlaneseq
    %v101 = vshrl.u32 %v100, 7
    %v102 = vadd.s32 %v101, 8
    %103 = vset.pattern.permute.xlu0 %v102
    %104 = vperm.xlu0 %103, %v93
    %v105 = vpop.permute.xlu0 %104
    %v106 = vperm.slane %v40, 5
    %v107 = vlaneseq
    %v108 = vshrl.u32 %v107, 7
    %110 = vset.pattern.permute.xlu0 %v108
    %111 = vperm.xlu0 %110, %v106
    %v112 = vpop.permute.xlu0 %111
    %v113 = vlaneseq
    %v114 = vshrl.u32 %v113, 7
    %v115 = vadd.s32 %v114, 8
    %116 = vset.pattern.permute.xlu0 %v115
    %117 = vperm.xlu0 %116, %v106
    %v118 = vpop.permute.xlu0 %117
    %v119 = vperm.slane %v40, 6
    %v120 = vlaneseq
    %v121 = vshrl.u32 %v120, 7
    %123 = vset.pattern.permute.xlu0 %v121
    %124 = vperm.xlu0 %123, %v119
    %v125 = vpop.permute.xlu0 %124
    %v126 = vlaneseq
    %v127 = vshrl.u32 %v126, 7
    %v128 = vadd.s32 %v127, 8
    %129 = vset.pattern.permute.xlu0 %v128
    %130 = vperm.xlu0 %129, %v119
    %v131 = vpop.permute.xlu0 %130
    %v132 = vperm.slane %v40, 7
    %v133 = vlaneseq
    %v134 = vshrl.u32 %v133, 7
    %136 = vset.pattern.permute.xlu0 %v134
    %137 = vperm.xlu0 %136, %v132
    %v138 = vpop.permute.xlu0 %137
    %v139 = vlaneseq
    %v140 = vshrl.u32 %v139, 7
    %v141 = vadd.s32 %v140, 8
    %142 = vset.pattern.permute.xlu0 %v141
    %143 = vperm.xlu0 %142, %v132
    %v144 = vpop.permute.xlu0 %143
    %v146 = vrot.slane %v31, 1
    %v147 = vrot.slane %v31, 2
    %v148 = vrot.slane %v31, 3
    %v149 = vrot.slane %v31, 4
    %v150 = vrot.slane %v31, 5
    %v151 = vrot.slane %v31, 6
    %v152 = vrot.slane %v31, 7
    %v153 = vperm.slane %v31, 0
    %v154 = vperm.slane %v146, 0
    %v155 = vperm.slane %v147, 0
    %v156 = vperm.slane %v148, 0
    %v157 = vperm.slane %v149, 0
    %v158 = vperm.slane %v150, 0
    %v159 = vperm.slane %v151, 0
    %v160 = vperm.slane %v152, 0
    %v169 = vmul.f32 %v47, %v153
    %v170 = vmul.f32 %v53, %v153
    %v171 = vmul.f32 %v60, %v154
    %v172 = vmul.f32 %v66, %v154
    %v173 = vmul.f32 %v73, %v155
    %v174 = vmul.f32 %v79, %v155
    %v175 = vmul.f32 %v86, %v156
    %v176 = vmul.f32 %v92, %v156
    %v177 = vmul.f32 %v99, %v157
    %v178 = vmul.f32 %v105, %v157
    %v179 = vmul.f32 %v112, %v158
    %v180 = vmul.f32 %v118, %v158
    %v181 = vmul.f32 %v125, %v159
    %v182 = vmul.f32 %v131, %v159
    %v183 = vmul.f32 %v138, %v160
    %v184 = vmul.f32 %v144, %v160
    %v185 = vrot.slane %v173, 4
    %vm186 = vcmask 1047556
    %v187 = vsel %vm186, %v185, %v169
    %v188 = vrot.slane %v169, 4
    %v189 = vsel %vm186, %v173, %v188
    %v191 = vunpack.c.l.s4 1983009808
    %v192 = vunpack.c.0.s8 %v191
    %v193 = vperm.slane %v187, %v192
    %v195 = vunpack.c.l.s4 1983009808
    %v196 = vunpack.c.0.s8 %v195
    %v197 = vperm.slane %v189, %v196
    %v198 = vrot.slane %v175, 4
    %v199 = vsel %vm186, %v198, %v171
    %v200 = vrot.slane %v171, 4
    %v201 = vsel %vm186, %v175, %v200
    %v203 = vunpack.c.l.s4 1983009808
    %v204 = vunpack.c.0.s8 %v203
    %v205 = vperm.slane %v199, %v204
    %v207 = vunpack.c.l.s4 1983009808
    %v208 = vunpack.c.0.s8 %v207
    %v209 = vperm.slane %v201, %v208
    %v210 = vrot.slane %v181, 4
    %v211 = vsel %vm186, %v210, %v177
    %v212 = vrot.slane %v177, 4
    %v213 = vsel %vm186, %v181, %v212
    %v215 = vunpack.c.l.s4 1983009808
    %v216 = vunpack.c.0.s8 %v215
    %v217 = vperm.slane %v211, %v216
    %v219 = vunpack.c.l.s4 1983009808
    %v220 = vunpack.c.0.s8 %v219
    %v221 = vperm.slane %v213, %v220
    %v222 = vrot.slane %v183, 4
    %v223 = vsel %vm186, %v222, %v179
    %v224 = vrot.slane %v179, 4
    %v225 = vsel %vm186, %v183, %v224
    %v227 = vunpack.c.l.s4 1983009808
    %v228 = vunpack.c.0.s8 %v227
    %v229 = vperm.slane %v223, %v228
    %v231 = vunpack.c.l.s4 1983009808
    %v232 = vunpack.c.0.s8 %v231
    %v233 = vperm.slane %v225, %v232
    %v234 = vrot.slane %v205, 4
    %v235 = vsel %vm186, %v234, %v193
    %v236 = vrot.slane %v193, 4
    %v237 = vsel %vm186, %v205, %v236
    %v239 = vunpack.c.l.s4 1934713408
    %v240 = vunpack.c.0.s8 %v239
    %v241 = vperm.slane %v235, %v240
    %v243 = vunpack.c.l.s4 1934713408
    %v244 = vunpack.c.0.s8 %v243
    %v245 = vperm.slane %v237, %v244
    %v246 = vrot.slane %v209, 4
    %v247 = vsel %vm186, %v246, %v197
    %v248 = vrot.slane %v197, 4
    %v249 = vsel %vm186, %v209, %v248
    %v251 = vunpack.c.l.s4 1934713408
    %v252 = vunpack.c.0.s8 %v251
    %v253 = vperm.slane %v247, %v252
    %v255 = vunpack.c.l.s4 1934713408
    %v256 = vunpack.c.0.s8 %v255
    %v257 = vperm.slane %v249, %v256
    %v258 = vrot.slane %v229, 4
    %v259 = vsel %vm186, %v258, %v217
    %v260 = vrot.slane %v217, 4
    %v261 = vsel %vm186, %v229, %v260
    %v263 = vunpack.c.l.s4 1934713408
    %v264 = vunpack.c.0.s8 %v263
    %v265 = vperm.slane %v259, %v264
    %v267 = vunpack.c.l.s4 1934713408
    %v268 = vunpack.c.0.s8 %v267
    %v269 = vperm.slane %v261, %v268
    %v270 = vrot.slane %v233, 4
    %v271 = vsel %vm186, %v270, %v221
    %v272 = vrot.slane %v221, 4
    %v273 = vsel %vm186, %v233, %v272
    %v275 = vunpack.c.l.s4 1934713408
    %v276 = vunpack.c.0.s8 %v275
    %v277 = vperm.slane %v271, %v276
    %v279 = vunpack.c.l.s4 1934713408
    %v280 = vunpack.c.0.s8 %v279
    %v281 = vperm.slane %v273, %v280
    %v282 = vrot.slane %v265, 4
    %v283 = vsel %vm186, %v282, %v241
    %v284 = vrot.slane %v241, 4
    %v285 = vsel %vm186, %v265, %v284
    %v286 = vrot.slane %v269, 4
    %v287 = vsel %vm186, %v286, %v245
    %v288 = vrot.slane %v245, 4
    %v289 = vsel %vm186, %v269, %v288
    %v290 = vrot.slane %v277, 4
    %v291 = vsel %vm186, %v290, %v253
    %v292 = vrot.slane %v253, 4
    %v293 = vsel %vm186, %v277, %v292
    %v294 = vrot.slane %v281, 4
    %v295 = vsel %vm186, %v294, %v257
    %v296 = vrot.slane %v257, 4
    %v297 = vsel %vm186, %v281, %v296
    %v298 = vrot.slane %v174, 4
    %v299 = vsel %vm186, %v298, %v170
    %v300 = vrot.slane %v170, 4
    %v301 = vsel %vm186, %v174, %v300
    %v303 = vunpack.c.l.s4 1983009808
    %v304 = vunpack.c.0.s8 %v303
    %v305 = vperm.slane %v299, %v304
    %v307 = vunpack.c.l.s4 1983009808
    %v308 = vunpack.c.0.s8 %v307
    %v309 = vperm.slane %v301, %v308
    %v310 = vrot.slane %v176, 4
    %v311 = vsel %vm186, %v310, %v172
    %v312 = vrot.slane %v172, 4
    %v313 = vsel %vm186, %v176, %v312
    %v315 = vunpack.c.l.s4 1983009808
    %v316 = vunpack.c.0.s8 %v315
    %v317 = vperm.slane %v311, %v316
    %v319 = vunpack.c.l.s4 1983009808
    %v320 = vunpack.c.0.s8 %v319
    %v321 = vperm.slane %v313, %v320
    %v322 = vrot.slane %v182, 4
    %v323 = vsel %vm186, %v322, %v178
    %v324 = vrot.slane %v178, 4
    %v325 = vsel %vm186, %v182, %v324
    %v327 = vunpack.c.l.s4 1983009808
    %v328 = vunpack.c.0.s8 %v327
    %v329 = vperm.slane %v323, %v328
    %v331 = vunpack.c.l.s4 1983009808
    %v332 = vunpack.c.0.s8 %v331
    %v333 = vperm.slane %v325, %v332
    %v334 = vrot.slane %v184, 4
    %v335 = vsel %vm186, %v334, %v180
    %v336 = vrot.slane %v180, 4
    %v337 = vsel %vm186, %v184, %v336
    %v339 = vunpack.c.l.s4 1983009808
    %v340 = vunpack.c.0.s8 %v339
    %v341 = vperm.slane %v335, %v340
    %v343 = vunpack.c.l.s4 1983009808
    %v344 = vunpack.c.0.s8 %v343
    %v345 = vperm.slane %v337, %v344
    %v346 = vrot.slane %v317, 4
    %v347 = vsel %vm186, %v346, %v305
    %v348 = vrot.slane %v305, 4
    %v349 = vsel %vm186, %v317, %v348
    %v351 = vunpack.c.l.s4 1934713408
    %v352 = vunpack.c.0.s8 %v351
    %v353 = vperm.slane %v347, %v352
    %v355 = vunpack.c.l.s4 1934713408
    %v356 = vunpack.c.0.s8 %v355
    %v357 = vperm.slane %v349, %v356
    %v358 = vrot.slane %v321, 4
    %v359 = vsel %vm186, %v358, %v309
    %v360 = vrot.slane %v309, 4
    %v361 = vsel %vm186, %v321, %v360
    %v363 = vunpack.c.l.s4 1934713408
    %v364 = vunpack.c.0.s8 %v363
    %v365 = vperm.slane %v359, %v364
    %v367 = vunpack.c.l.s4 1934713408
    %v368 = vunpack.c.0.s8 %v367
    %v369 = vperm.slane %v361, %v368
    %v370 = vrot.slane %v341, 4
    %v371 = vsel %vm186, %v370, %v329
    %v372 = vrot.slane %v329, 4
    %v373 = vsel %vm186, %v341, %v372
    %v375 = vunpack.c.l.s4 1934713408
    %v376 = vunpack.c.0.s8 %v375
    %v377 = vperm.slane %v371, %v376
    %v379 = vunpack.c.l.s4 1934713408
    %v380 = vunpack.c.0.s8 %v379
    %v381 = vperm.slane %v373, %v380
    %v382 = vrot.slane %v345, 4
    %v383 = vsel %vm186, %v382, %v333
    %v384 = vrot.slane %v333, 4
    %v385 = vsel %vm186, %v345, %v384
    %v387 = vunpack.c.l.s4 1934713408
    %v388 = vunpack.c.0.s8 %v387
    %v389 = vperm.slane %v383, %v388
    %v391 = vunpack.c.l.s4 1934713408
    %v392 = vunpack.c.0.s8 %v391
    %v393 = vperm.slane %v385, %v392
    %v394 = vrot.slane %v377, 4
    %v395 = vsel %vm186, %v394, %v353
    %v396 = vrot.slane %v353, 4
    %v397 = vsel %vm186, %v377, %v396
    %v398 = vrot.slane %v381, 4
    %v399 = vsel %vm186, %v398, %v357
    %v400 = vrot.slane %v357, 4
    %v401 = vsel %vm186, %v381, %v400
    %v402 = vrot.slane %v389, 4
    %v403 = vsel %vm186, %v402, %v365
    %v404 = vrot.slane %v365, 4
    %v405 = vsel %vm186, %v389, %v404
    %v406 = vrot.slane %v393, 4
    %v407 = vsel %vm186, %v406, %v369
    %v408 = vrot.slane %v369, 4
    %v409 = vsel %vm186, %v393, %v408
    %411 = vrot.lane.b32.xlu0 %v285, 16
    %v412 = vpop.permute.xlu0 %411
    %415 = vrot.lane.b32.xlu0 %v287, 32
    %v416 = vpop.permute.xlu0 %415
    %419 = vrot.lane.b32.xlu0 %v289, 48
    %v420 = vpop.permute.xlu0 %419
    %423 = vrot.lane.b32.xlu0 %v291, 64
    %v424 = vpop.permute.xlu0 %423
    %427 = vrot.lane.b32.xlu0 %v293, 80
    %v428 = vpop.permute.xlu0 %427
    %431 = vrot.lane.b32.xlu0 %v295, 96
    %v432 = vpop.permute.xlu0 %431
    %435 = vrot.lane.b32.xlu0 %v297, 112
    %v436 = vpop.permute.xlu0 %435
    %439 = vrot.lane.b32.xlu0 %v397, 16
    %v440 = vpop.permute.xlu0 %439
    %443 = vrot.lane.b32.xlu0 %v399, 32
    %v444 = vpop.permute.xlu0 %443
    %447 = vrot.lane.b32.xlu0 %v401, 48
    %v448 = vpop.permute.xlu0 %447
    %451 = vrot.lane.b32.xlu0 %v403, 64
    %v452 = vpop.permute.xlu0 %451
    %455 = vrot.lane.b32.xlu0 %v405, 80
    %v456 = vpop.permute.xlu0 %455
    %459 = vrot.lane.b32.xlu0 %v407, 96
    %v460 = vpop.permute.xlu0 %459
    %463 = vrot.lane.b32.xlu0 %v409, 112
    %v464 = vpop.permute.xlu0 %463
    %vm466 = vcmask 130048
    %v467 = vsel %vm466, %v283, %v412
    %vm468 = vcmask 261120
    %v469 = vsel %vm468, %v467, %v416
    %vm470 = vcmask 392192
    %v471 = vsel %vm470, %v469, %v420
    %vm472 = vcmask 523264
    %v473 = vsel %vm472, %v471, %v424
    %vm474 = vcmask 654336
    %v475 = vsel %vm474, %v473, %v428
    %vm476 = vcmask 785408
    %v477 = vsel %vm476, %v475, %v432
    %vm478 = vcmask 916480
    %v479 = vsel %vm478, %v477, %v436
    %v480 = vsel %vm466, %v395, %v440
    %v481 = vsel %vm468, %v480, %v444
    %v482 = vsel %vm470, %v481, %v448
    %v483 = vsel %vm472, %v482, %v452
    %v484 = vsel %vm474, %v483, %v456
    %v485 = vsel %vm476, %v484, %v460
    %v486 = vsel %vm478, %v485, %v464
    %487 = vst [vmem:[#allocation2] sm:$0xff] %v479
    %488 = vst [vmem:[#allocation2 + $0x8] sm:$0xff] %v486
    // Predicated region
    $region6: #{tpu_custom_call.1} parent=1 // pred_check
      _
    $region7: #{tpu_custom_call.1} parent=1 // pred_check_branch
      %490 = sbr.rel (0) target = $region9
    $region8: #{tpu_custom_call.1} parent=1 // pred_region
      %492 = vsyncadd [#allocation3], 0
      %s494 = sshll.u32 [#allocation2], 4
      %s495 = int_to_ptr.vmem [resolvable:$true] %s494
      %s496 = sshll.u32 %s1, 4
      %s497 = int_to_ptr.hbm [resolvable:$true] %s496
      %499 = dma.vmem_to_hbm [thread:$0]  %s495, 256, %s497, [#allocation3]
    $region9: #{tpu_custom_call.1} parent=1 // pred_fallthru
      _
    // Predicated region
    $region10: #{tpu_custom_call.1} parent=1 // pred_check
      _
    $region11: #{tpu_custom_call.1} parent=1 // pred_check_branch
      %501 = sbr.rel (0) target = $region13
    $region12: #{tpu_custom_call.1} parent=1 // pred_region
      %503 = dma.done [#allocation3], 256
    $region13: #{tpu_custom_call.1} parent=1 // pred_fallthru
      _
    %504 = vsyncpa [#allocation3], 1

</llo_original>
